<compile_context>
chip_gen: v7x
topology: tpu7x:2x2x1
jax: 0.10.0
libtpu: 0.0.40
codegen_flags: <defaults>
</compile_context>

<pallas_src>
import functools

import jax
import jax.numpy as jnp
from jax.experimental import pallas as pl
from jax.experimental.pallas import tpu as pltpu

# ----------------------------- configuration -----------------------------
BATCH = 2          # batch size
SEQ = 8            # current sequence length (bert_output.size(1))
HIDDEN = 32        # bert_config.hidden_size
CONTENT_DIM = 16   # config.content_dim
NUM_CONCEPTS = 4   # concepts retrieved per token (content_ids.shape[-1])
VOCAB = 64         # content-embedding vocabulary size
SEQ_LEN_CFG = 10   # config.seq_len (>= SEQ; forward slices the trailing SEQ positions)


def _rup(x, m):
    return (x + m - 1) // m * m


# -------------------------------- kernel ----------------------------------
def ki_kernel(acts_ref, prm_ref, out_ref, *, n, k, c, h, vp,
              r_sent, r_mask, r_ids, o_emb, o_wlt, o_w2, o_b2):
    f32 = jnp.float32
    k1 = k + 1

    # ---- static, 8-row-aligned views into the packed activation slab.
    bert = acts_ref[0:n, 0:h]                       # (N, H)   N = B*S
    sent = acts_ref[r_sent:r_sent + n, 0:h]         # (N, H)   sentinel row, pre-expanded
    mask = acts_ref[r_mask:r_mask + n, 0:k1]        # (N, K+1) content mask (1 = valid)
    # ids were stored as f32 (values < 128 are exactly representable); cast back.
    ids = acts_ref[r_ids:r_ids + n, 0:k].astype(jnp.int32)   # (N, K)

    # ---- static views into the packed parameter slab (weights pre-transposed
    #      on the host, so no in-kernel .T / relayouts).
    emb_t = prm_ref[0:c, :]                         # (C, Vp)  = emb^T, zero-padded
    emb_v = prm_ref[o_emb:o_emb + vp, 0:c]          # (Vp, C)  = emb,   zero-padded
    wl_t = prm_ref[o_wlt:o_wlt + h, 0:c]            # (H, C)   = W_lin^T
    w2 = prm_ref[o_w2:o_w2 + h, 0:c]                # (H, C)   = W_lin2
    b2 = prm_ref[o_b2:o_b2 + 1, 0:c]                # (1, C)   = b_lin2

    # sentinel content vector per output row: linear2(sentinel token).
    sent_c = jnp.dot(sent, w2, preferred_element_type=f32) + b2        # (N, C)

    # score_j = (content_j @ W_lin + b_lin) . bert
    #         = content_j . (bert @ W_lin^T) + (b_lin . bert)
    # The b_lin . bert term is identical for every slot j of a row, so it cancels
    # exactly under the softmax's shift invariance -> dropped (no bias dot).
    proj = jnp.dot(bert, wl_t, preferred_element_type=f32)             # (N, C)

    # Per-vocab scores: ep[n, v] = proj[n] . emb[v]   (vocab padded to 128 lanes).
    ep = jnp.dot(proj, emb_t, preferred_element_type=f32)              # (N, Vp)

    # One lane-dense (N, Vp) one-hot per concept slot (static unroll over K);
    # fuses the embedding gather with the dot product — no jnp.take, no concat.
    # Out-of-range ids select the all-zero padded embedding row (same convention
    # as the previous version).
    iota_v = jax.lax.broadcasted_iota(jnp.int32, (n, vp), 1)
    onehots = []
    scores = []
    for j in range(k):
        oh = (ids[:, j:j + 1] == iota_v).astype(f32)                   # (N, Vp)
        onehots.append(oh)
        scores.append(jnp.sum(oh * ep, axis=-1, keepdims=True))        # (N, 1)
    scores.append(jnp.sum(sent_c * proj, axis=-1, keepdims=True))      # sentinel slot

    # Masked softmax over the K+1 slots, then re-mask (torch.mul(weight, mask)).
    masked = [scores[j] + (1.0 - mask[:, j:j + 1]) * -10000.0 for j in range(k1)]
    m = masked[0]
    for j in range(1, k1):
        m = jnp.maximum(m, masked[j])
    ps = [jnp.exp(sj - m) for sj in masked]                            # (N, 1) each
    denom = ps[0]
    for j in range(1, k1):
        denom = denom + ps[j]
    inv = pl.reciprocal(denom, approx=True)          # EUP slot
    inv = inv * (2.0 - denom * inv)                  # one Newton step -> f32 accurate
    wts = [ps[j] * inv * mask[:, j:j + 1] for j in range(k1)]          # (N, 1) each

    # output = sum_j weight_j * content_j : concept part goes back through the
    # vocab axis (single (N,Vp)x(Vp,C) matmul); sentinel part is a rank-1 add.
    wsum_v = wts[0] * onehots[0]
    for j in range(1, k):
        wsum_v = wsum_v + wts[j] * onehots[j]                          # (N, Vp)
    out = jnp.dot(wsum_v, emb_v, preferred_element_type=f32) + wts[k] * sent_c
    out_ref[...] = out.astype(out_ref.dtype)


# ------------------------------ host wrapper -------------------------------
def knowledge_integration_pallas(bert_output, content_ids, content_mask, params,
                                 *, model_name="roberta", seq_len=SEQ_LEN_CFG):
    """Pallas equivalent of knowledge_integration.forward."""
    if model_name == "xlnet":
        bert_output = jnp.transpose(bert_output, (1, 0, 2))
    b, s, h = bert_output.shape
    k = content_ids.shape[-1]
    v, c = params["emb"].shape
    n = b * s
    k1 = k + 1
    vp = _rup(max(v, 1), 128)           # vocab padded to full lane width
    f32 = jnp.float32
    assert c <= vp, "content_dim must fit in the padded vocab lane width"

    # contents slice [:, seq_len - S:, :, :] is pure indexing -> apply to ids.
    ids = content_ids[:, seq_len - s:, :].reshape(n, k).astype(f32)    # exact ints
    # roberta sentinel: token 0; xlnet sentinel: bert_output[:, -2:-1, :].
    sent_idx = 0 if model_name == "roberta" else s - 2
    sent_exp = jnp.repeat(bert_output[:, sent_idx, :], s, axis=0)      # (N, H)
    bert2d = bert_output.reshape(n, h).astype(f32)
    mask2d = content_mask.reshape(n, k1).astype(f32)

    # ---- activation slab: ONE input DMA for bert rows, expanded sentinel rows,
    #      content mask and (f32-encoded) concept ids. Blocks 8-row aligned.
    w_act = max(h, k1)
    blk = _rup(n, 8)
    r_sent, r_mask, r_ids = blk, 2 * blk, 3 * blk
    acts = jnp.zeros((4 * blk, w_act), f32)
    acts = acts.at[0:n, 0:h].set(bert2d)
    acts = acts.at[r_sent:r_sent + n, 0:h].set(sent_exp)
    acts = acts.at[r_mask:r_mask + n, 0:k1].set(mask2d)
    acts = acts.at[r_ids:r_ids + n, 0:k].set(ids)

    # ---- parameter slab: ONE input DMA for emb (both orientations, zero padded
    #      to 128 vocab lanes), W_lin^T, W_lin2 and b_lin2. b_lin is dropped: it
    #      only shifts every slot's score equally, which cancels under softmax.
    o_emb = _rup(c, 8)
    o_wlt = o_emb + vp
    o_w2 = o_wlt + _rup(h, 8)
    o_b2 = o_w2 + _rup(h, 8)
    prm = jnp.zeros((o_b2 + 8, vp), f32)
    prm = prm.at[0:c, 0:v].set(params["emb"].T)                        # (C, Vp)
    prm = prm.at[o_emb:o_emb + v, 0:c].set(params["emb"])              # (Vp, C)
    prm = prm.at[o_wlt:o_wlt + h, 0:c].set(params["w_lin"].T)          # (H, C)
    prm = prm.at[o_w2:o_w2 + h, 0:c].set(params["w_lin2"])             # (H, C)
    prm = prm.at[o_b2:o_b2 + 1, 0:c].set(params["b_lin2"].reshape(1, c))

    # NOTE: for production sizes (large vocab / seq) this gridless all-resident
    # design must become a row-tiled grid ("parallel" for v7x's 2 TCs) with
    # scalar-prefetched id gathers; at these toy shapes one call is optimal.
    vmem = lambda: pl.BlockSpec(memory_space=pltpu.MemorySpace.VMEM)
    out = pl.pallas_call(
        functools.partial(ki_kernel, n=n, k=k, c=c, h=h, vp=vp,
                          r_sent=r_sent, r_mask=r_mask, r_ids=r_ids,
                          o_emb=o_emb, o_wlt=o_wlt, o_w2=o_w2, o_b2=o_b2),
        out_shape=jax.ShapeDtypeStruct((n, c), f32),
        in_specs=[vmem(), vmem()],
        out_specs=vmem(),
    )(acts, prm)
    return out.reshape(b, s, c).astype(bert_output.dtype)


# ------------------------------ JAX reference -------------------------------
def ref_knowledge_integration(bert_output, content_ids, content_mask, params,
                              *, model_name="roberta", seq_len=SEQ_LEN_CFG):
    if model_name == "xlnet":
        bert_output = jnp.transpose(bert_output, (1, 0, 2))
    b, s, h = bert_output.shape
    emb = params["emb"]
    contents = emb[content_ids][:, seq_len - s:, :, :]                 # (B,S,K,C)
    if model_name == "roberta":
        sentinel = bert_output[:, 0:1, :]
    else:
        sentinel = bert_output[:, -2:-1, :]
    sentinel = sentinel @ params["w_lin2"] + params["b_lin2"]          # (B,1,C)
    c = sentinel.shape[-1]
    sentinel = jnp.broadcast_to(sentinel, (b, s, c))
    content_all = jnp.concatenate([contents, sentinel[:, :, None, :]], axis=2)
    content_trans = content_all @ params["w_lin"] + params["b_lin"]    # (B,S,K+1,H)
    atten_score = jnp.einsum("bsjh,bsh->bsj", content_trans, bert_output)
    atten_score = atten_score + (1.0 - content_mask) * -10000.0
    atten_weight = jax.nn.softmax(atten_score, axis=2) * content_mask
    return jnp.einsum("bsj,bsjc->bsc", atten_weight, content_all)      # (B,S,C)


# ---------------------------------- main ------------------------------------
if __name__ == "__main__":
    key = jax.random.PRNGKey(0)
    ks = jax.random.split(key, 8)

    bert_output = jax.random.normal(ks[0], (BATCH, SEQ, HIDDEN), jnp.float32)
    content_ids = jax.random.randint(ks[1], (BATCH, SEQ_LEN_CFG, NUM_CONCEPTS), 0, VOCAB)
    # mask: 1 = valid concept, 0 = padding; sentinel slot (last) always valid.
    content_mask = (jax.random.uniform(ks[2], (BATCH, SEQ, NUM_CONCEPTS + 1)) > 0.3)
    content_mask = content_mask.astype(jnp.float32).at[:, :, NUM_CONCEPTS].set(1.0)

    params = {
        "emb": 0.5 * jax.random.normal(ks[3], (VOCAB, CONTENT_DIM), jnp.float32),
        "w_lin": 0.1 * jax.random.normal(ks[4], (CONTENT_DIM, HIDDEN), jnp.float32),
        "b_lin": 0.05 * jax.random.normal(ks[5], (1, HIDDEN), jnp.float32),
        "w_lin2": 0.1 * jax.random.normal(ks[6], (HIDDEN, CONTENT_DIM), jnp.float32),
        "b_lin2": 0.05 * jax.random.normal(ks[7], (1, CONTENT_DIM), jnp.float32),
    }

    out = knowledge_integration_pallas(bert_output, content_ids, content_mask, params,
                                       model_name="roberta", seq_len=SEQ_LEN_CFG)
    out = jax.block_until_ready(out)

    ref = ref_knowledge_integration(bert_output, content_ids, content_mask, params,
                                    model_name="roberta", seq_len=SEQ_LEN_CFG)
    assert out.shape == (BATCH, SEQ, CONTENT_DIM)
    assert jnp.allclose(out, ref, atol=2e-3, rtol=2e-3), "mismatch vs JAX reference"
    print("KERNEL_OK")
</pallas_src>

<mosaic_0001>
module attributes {stable_mosaic.version = 11 : i64} {
  func.func @ki_kernel(%arg0: memref<64x32xf32, #tpu.memory_space<vmem>>, %arg1: memref<216x128xf32, #tpu.memory_space<vmem>>, %arg2: memref<16x16xf32, #tpu.memory_space<vmem>>) attributes {dimension_semantics = [], scalar_prefetch = 0 : i64, scratch_operands = 0 : i64, tpu.core_type = #tpu.core_type<tc>} {
    %c0 = arith.constant 0 : index
    %c0_0 = arith.constant 0 : index
    %0 = vector.load %arg0[%c0, %c0_0] : memref<64x32xf32, #tpu.memory_space<vmem>>, vector<16x32xf32>
    %c16 = arith.constant 16 : index
    %c0_1 = arith.constant 0 : index
    %1 = vector.load %arg0[%c16, %c0_1] : memref<64x32xf32, #tpu.memory_space<vmem>>, vector<16x32xf32>
    %c32 = arith.constant 32 : index
    %c0_2 = arith.constant 0 : index
    %2 = vector.load %arg0[%c32, %c0_2] : memref<64x32xf32, #tpu.memory_space<vmem>>, vector<16x5xf32>
    %c48 = arith.constant 48 : index
    %c0_3 = arith.constant 0 : index
    %3 = vector.load %arg0[%c48, %c0_3] : memref<64x32xf32, #tpu.memory_space<vmem>>, vector<16x4xf32>
    %4 = arith.fptosi %3 : vector<16x4xf32> to vector<16x4xi32>
    %c0_4 = arith.constant 0 : index
    %c0_5 = arith.constant 0 : index
    %5 = vector.load %arg1[%c0_4, %c0_5] : memref<216x128xf32, #tpu.memory_space<vmem>>, vector<16x128xf32>
    %c16_6 = arith.constant 16 : index
    %c0_7 = arith.constant 0 : index
    %6 = vector.load %arg1[%c16_6, %c0_7] : memref<216x128xf32, #tpu.memory_space<vmem>>, vector<128x16xf32>
    %c144 = arith.constant 144 : index
    %c0_8 = arith.constant 0 : index
    %7 = vector.load %arg1[%c144, %c0_8] : memref<216x128xf32, #tpu.memory_space<vmem>>, vector<32x16xf32>
    %c176 = arith.constant 176 : index
    %c0_9 = arith.constant 0 : index
    %8 = vector.load %arg1[%c176, %c0_9] : memref<216x128xf32, #tpu.memory_space<vmem>>, vector<32x16xf32>
    %c208 = arith.constant 208 : index
    %c0_10 = arith.constant 0 : index
    %9 = vector.load %arg1[%c208, %c0_10] : memref<216x128xf32, #tpu.memory_space<vmem>>, vector<1x16xf32>
    %cst = arith.constant dense<0.000000e+00> : vector<16x16xf32>
    %10 = tpu.matmul %1, %8, %cst {dimension_numbers = #tpu.dot_dimension_numbers<[1], [0], [0], [1], [0, 0, 1, 1], [], []>} : vector<16x32xf32>, vector<32x16xf32>, vector<16x16xf32> -> vector<16x16xf32>
    %11 = vector.broadcast %9 : vector<1x16xf32> to vector<16x16xf32>
    %12 = arith.addf %10, %11 : vector<16x16xf32>
    %cst_11 = arith.constant dense<0.000000e+00> : vector<16x16xf32>
    %13 = tpu.matmul %0, %7, %cst_11 {dimension_numbers = #tpu.dot_dimension_numbers<[1], [0], [0], [1], [0, 0, 1, 1], [], []>} : vector<16x32xf32>, vector<32x16xf32>, vector<16x16xf32> -> vector<16x16xf32>
    %cst_12 = arith.constant dense<0.000000e+00> : vector<16x128xf32>
    %14 = tpu.matmul %13, %5, %cst_12 {dimension_numbers = #tpu.dot_dimension_numbers<[1], [0], [0], [1], [0, 0, 1, 1], [], []>} : vector<16x16xf32>, vector<16x128xf32>, vector<16x128xf32> -> vector<16x128xf32>
    %15 = tpu.iota {dimensions = array<i32: 1>} : vector<16x128xi32>
    %16 = vector.extract_strided_slice %4 {offsets = [0, 0], sizes = [16, 1], strides = [1, 1]} : vector<16x4xi32> to vector<16x1xi32>
    %17 = vector.broadcast %16 : vector<16x1xi32> to vector<16x128xi32>
    %18 = arith.cmpi eq, %17, %15 : vector<16x128xi32>
    %19 = arith.extui %18 : vector<16x128xi1> to vector<16x128xi32>
    %20 = arith.sitofp %19 : vector<16x128xi32> to vector<16x128xf32>
    %21 = arith.mulf %20, %14 : vector<16x128xf32>
    %cst_13 = arith.constant dense<0.000000e+00> : vector<16xf32>
    %22 = vector.multi_reduction <add>, %21, %cst_13 [1] : vector<16x128xf32> to vector<16xf32>
    %23 = vector.shape_cast %22 : vector<16xf32> to vector<16x1xf32>
    %24 = vector.extract_strided_slice %4 {offsets = [0, 1], sizes = [16, 1], strides = [1, 1]} : vector<16x4xi32> to vector<16x1xi32>
    %25 = vector.broadcast %24 : vector<16x1xi32> to vector<16x128xi32>
    %26 = arith.cmpi eq, %25, %15 : vector<16x128xi32>
    %27 = arith.extui %26 : vector<16x128xi1> to vector<16x128xi32>
    %28 = arith.sitofp %27 : vector<16x128xi32> to vector<16x128xf32>
    %29 = arith.mulf %28, %14 : vector<16x128xf32>
    %cst_14 = arith.constant dense<0.000000e+00> : vector<16xf32>
    %30 = vector.multi_reduction <add>, %29, %cst_14 [1] : vector<16x128xf32> to vector<16xf32>
    %31 = vector.shape_cast %30 : vector<16xf32> to vector<16x1xf32>
    %32 = vector.extract_strided_slice %4 {offsets = [0, 2], sizes = [16, 1], strides = [1, 1]} : vector<16x4xi32> to vector<16x1xi32>
    %33 = vector.broadcast %32 : vector<16x1xi32> to vector<16x128xi32>
    %34 = arith.cmpi eq, %33, %15 : vector<16x128xi32>
    %35 = arith.extui %34 : vector<16x128xi1> to vector<16x128xi32>
    %36 = arith.sitofp %35 : vector<16x128xi32> to vector<16x128xf32>
    %37 = arith.mulf %36, %14 : vector<16x128xf32>
    %cst_15 = arith.constant dense<0.000000e+00> : vector<16xf32>
    %38 = vector.multi_reduction <add>, %37, %cst_15 [1] : vector<16x128xf32> to vector<16xf32>
    %39 = vector.shape_cast %38 : vector<16xf32> to vector<16x1xf32>
    %40 = vector.extract_strided_slice %4 {offsets = [0, 3], sizes = [16, 1], strides = [1, 1]} : vector<16x4xi32> to vector<16x1xi32>
    %41 = vector.broadcast %40 : vector<16x1xi32> to vector<16x128xi32>
    %42 = arith.cmpi eq, %41, %15 : vector<16x128xi32>
    %43 = arith.extui %42 : vector<16x128xi1> to vector<16x128xi32>
    %44 = arith.sitofp %43 : vector<16x128xi32> to vector<16x128xf32>
    %45 = arith.mulf %44, %14 : vector<16x128xf32>
    %cst_16 = arith.constant dense<0.000000e+00> : vector<16xf32>
    %46 = vector.multi_reduction <add>, %45, %cst_16 [1] : vector<16x128xf32> to vector<16xf32>
    %47 = vector.shape_cast %46 : vector<16xf32> to vector<16x1xf32>
    %48 = arith.mulf %12, %13 : vector<16x16xf32>
    %cst_17 = arith.constant dense<0.000000e+00> : vector<16xf32>
    %49 = vector.multi_reduction <add>, %48, %cst_17 [1] : vector<16x16xf32> to vector<16xf32>
    %50 = vector.shape_cast %49 : vector<16xf32> to vector<16x1xf32>
    %51 = vector.extract_strided_slice %2 {offsets = [0, 0], sizes = [16, 1], strides = [1, 1]} : vector<16x5xf32> to vector<16x1xf32>
    %cst_18 = arith.constant 1.000000e+00 : f32
    %52 = vector.broadcast %cst_18 : f32 to vector<16x1xf32>
    %53 = arith.subf %52, %51 : vector<16x1xf32>
    %cst_19 = arith.constant -1.000000e+04 : f32
    %54 = vector.broadcast %cst_19 : f32 to vector<16x1xf32>
    %55 = arith.mulf %53, %54 : vector<16x1xf32>
    %56 = arith.addf %23, %55 : vector<16x1xf32>
    %57 = vector.extract_strided_slice %2 {offsets = [0, 1], sizes = [16, 1], strides = [1, 1]} : vector<16x5xf32> to vector<16x1xf32>
    %cst_20 = arith.constant 1.000000e+00 : f32
    %58 = vector.broadcast %cst_20 : f32 to vector<16x1xf32>
    %59 = arith.subf %58, %57 : vector<16x1xf32>
    %cst_21 = arith.constant -1.000000e+04 : f32
    %60 = vector.broadcast %cst_21 : f32 to vector<16x1xf32>
    %61 = arith.mulf %59, %60 : vector<16x1xf32>
    %62 = arith.addf %31, %61 : vector<16x1xf32>
    %63 = vector.extract_strided_slice %2 {offsets = [0, 2], sizes = [16, 1], strides = [1, 1]} : vector<16x5xf32> to vector<16x1xf32>
    %cst_22 = arith.constant 1.000000e+00 : f32
    %64 = vector.broadcast %cst_22 : f32 to vector<16x1xf32>
    %65 = arith.subf %64, %63 : vector<16x1xf32>
    %cst_23 = arith.constant -1.000000e+04 : f32
    %66 = vector.broadcast %cst_23 : f32 to vector<16x1xf32>
    %67 = arith.mulf %65, %66 : vector<16x1xf32>
    %68 = arith.addf %39, %67 : vector<16x1xf32>
    %69 = vector.extract_strided_slice %2 {offsets = [0, 3], sizes = [16, 1], strides = [1, 1]} : vector<16x5xf32> to vector<16x1xf32>
    %cst_24 = arith.constant 1.000000e+00 : f32
    %70 = vector.broadcast %cst_24 : f32 to vector<16x1xf32>
    %71 = arith.subf %70, %69 : vector<16x1xf32>
    %cst_25 = arith.constant -1.000000e+04 : f32
    %72 = vector.broadcast %cst_25 : f32 to vector<16x1xf32>
    %73 = arith.mulf %71, %72 : vector<16x1xf32>
    %74 = arith.addf %47, %73 : vector<16x1xf32>
    %75 = vector.extract_strided_slice %2 {offsets = [0, 4], sizes = [16, 1], strides = [1, 1]} : vector<16x5xf32> to vector<16x1xf32>
    %cst_26 = arith.constant 1.000000e+00 : f32
    %76 = vector.broadcast %cst_26 : f32 to vector<16x1xf32>
    %77 = arith.subf %76, %75 : vector<16x1xf32>
    %cst_27 = arith.constant -1.000000e+04 : f32
    %78 = vector.broadcast %cst_27 : f32 to vector<16x1xf32>
    %79 = arith.mulf %77, %78 : vector<16x1xf32>
    %80 = arith.addf %50, %79 : vector<16x1xf32>
    %81 = arith.maximumf %56, %62 : vector<16x1xf32>
    %82 = arith.maximumf %81, %68 : vector<16x1xf32>
    %83 = arith.maximumf %82, %74 : vector<16x1xf32>
    %84 = arith.maximumf %83, %80 : vector<16x1xf32>
    %85 = arith.subf %56, %84 : vector<16x1xf32>
    %86 = math.exp %85 : vector<16x1xf32>
    %87 = arith.subf %62, %84 : vector<16x1xf32>
    %88 = math.exp %87 : vector<16x1xf32>
    %89 = arith.subf %68, %84 : vector<16x1xf32>
    %90 = math.exp %89 : vector<16x1xf32>
    %91 = arith.subf %74, %84 : vector<16x1xf32>
    %92 = math.exp %91 : vector<16x1xf32>
    %93 = arith.subf %80, %84 : vector<16x1xf32>
    %94 = math.exp %93 : vector<16x1xf32>
    %95 = arith.addf %86, %88 : vector<16x1xf32>
    %96 = arith.addf %95, %90 : vector<16x1xf32>
    %97 = arith.addf %96, %92 : vector<16x1xf32>
    %98 = arith.addf %97, %94 : vector<16x1xf32>
    %99 = tpu.reciprocal %98 {approx = true} : vector<16x1xf32> -> vector<16x1xf32>
    %100 = arith.mulf %98, %99 : vector<16x1xf32>
    %cst_28 = arith.constant 2.000000e+00 : f32
    %101 = vector.broadcast %cst_28 : f32 to vector<16x1xf32>
    %102 = arith.subf %101, %100 : vector<16x1xf32>
    %103 = arith.mulf %99, %102 : vector<16x1xf32>
    %104 = arith.mulf %86, %103 : vector<16x1xf32>
    %105 = vector.extract_strided_slice %2 {offsets = [0, 0], sizes = [16, 1], strides = [1, 1]} : vector<16x5xf32> to vector<16x1xf32>
    %106 = arith.mulf %104, %105 : vector<16x1xf32>
    %107 = arith.mulf %88, %103 : vector<16x1xf32>
    %108 = vector.extract_strided_slice %2 {offsets = [0, 1], sizes = [16, 1], strides = [1, 1]} : vector<16x5xf32> to vector<16x1xf32>
    %109 = arith.mulf %107, %108 : vector<16x1xf32>
    %110 = arith.mulf %90, %103 : vector<16x1xf32>
    %111 = vector.extract_strided_slice %2 {offsets = [0, 2], sizes = [16, 1], strides = [1, 1]} : vector<16x5xf32> to vector<16x1xf32>
    %112 = arith.mulf %110, %111 : vector<16x1xf32>
    %113 = arith.mulf %92, %103 : vector<16x1xf32>
    %114 = vector.extract_strided_slice %2 {offsets = [0, 3], sizes = [16, 1], strides = [1, 1]} : vector<16x5xf32> to vector<16x1xf32>
    %115 = arith.mulf %113, %114 : vector<16x1xf32>
    %116 = arith.mulf %94, %103 : vector<16x1xf32>
    %117 = vector.extract_strided_slice %2 {offsets = [0, 4], sizes = [16, 1], strides = [1, 1]} : vector<16x5xf32> to vector<16x1xf32>
    %118 = arith.mulf %116, %117 : vector<16x1xf32>
    %119 = vector.broadcast %106 : vector<16x1xf32> to vector<16x128xf32>
    %120 = arith.mulf %119, %20 : vector<16x128xf32>
    %121 = vector.broadcast %109 : vector<16x1xf32> to vector<16x128xf32>
    %122 = arith.mulf %121, %28 : vector<16x128xf32>
    %123 = arith.addf %120, %122 : vector<16x128xf32>
    %124 = vector.broadcast %112 : vector<16x1xf32> to vector<16x128xf32>
    %125 = arith.mulf %124, %36 : vector<16x128xf32>
    %126 = arith.addf %123, %125 : vector<16x128xf32>
    %127 = vector.broadcast %115 : vector<16x1xf32> to vector<16x128xf32>
    %128 = arith.mulf %127, %44 : vector<16x128xf32>
    %129 = arith.addf %126, %128 : vector<16x128xf32>
    %cst_29 = arith.constant dense<0.000000e+00> : vector<16x16xf32>
    %130 = tpu.matmul %129, %6, %cst_29 {dimension_numbers = #tpu.dot_dimension_numbers<[1], [0], [0], [1], [0, 0, 1, 1], [], []>} : vector<16x128xf32>, vector<128x16xf32>, vector<16x16xf32> -> vector<16x16xf32>
    %131 = vector.broadcast %118 : vector<16x1xf32> to vector<16x16xf32>
    %132 = arith.mulf %131, %12 : vector<16x16xf32>
    %133 = arith.addf %130, %132 : vector<16x16xf32>
    %c0_30 = arith.constant 0 : index
    %c0_31 = arith.constant 0 : index
    %134 = vector.load %arg2[%c0_30, %c0_31] : memref<16x16xf32, #tpu.memory_space<vmem>>, vector<16x16xf32>
    tpu.vector_store %arg2[%c0_30, %c0_31], %133 {strides = array<i32>} : memref<16x16xf32, #tpu.memory_space<vmem>>, vector<16x16xf32>,
    return
  }
}

</mosaic_0001>

<llo_original>
// kernel: tpu_custom_call.1
$region0: #{tpu_custom_call.1}
  #allocation0 [shape = 'u32[]', space=smem, size = 0x4, offset = 0x4, fixed_abs, tag = 'smem constant byte address 0x4 - core index']
  #allocation1 [shape = 'u32[144,128]{1,0:T(1,128)}', space=vmem, size = 0x12000, scoped, tag = 'internal scratch']
  %s0 = inlined_call_operand.vmem [shape: f32[64,32], index: 0, kind: input, shape index: {}]
  %s1 = inlined_call_operand.hbm [shape: f32[216,128], index: 1, kind: input, shape index: {}]
  %s2 = inlined_call_operand.hbm [shape: f32[16,16], index: 2, kind: output, shape index: {}]
  %s3 = sld [smem:[#allocation0]]
  $region22: #{tpu_custom_call.1} parent=0
    _
  %s5 = ssub.s32 1, %s3
  %s6 = scalar_select 0, %s5, %s3
  $region1: #{tpu_custom_call.1} parent=0
    #allocation2 [shape = 'u8[110592]{0}', space=vmem, size = 0x1b000, scoped, tag = 'input window, operand 1, single buffered']
    #allocation3 [shape = 's32[1]{0}', space=sflag, size = 0x4, scoped, tag = 'scoped memory for tpu_custom_call.1']
    #allocation4 [shape = 's32[1]{0}', space=sflag, size = 0x4, scoped, tag = 'scoped memory for tpu_custom_call.1']
    #allocation5 [shape = 'u8[8192]{0}', space=vmem, size = 0x2000, scoped, tag = 'output window, operand 0, single buffered']
    %7 = vsyncpa [#allocation3], 0
    %8 = vsyncpa [#allocation4], 0
    // Predicated region
    $region2: #{tpu_custom_call.1} parent=1 // pred_check
      _
    $region3: #{tpu_custom_call.1} parent=1 // pred_check_branch
      %10 = sbr.rel (0) target = $region5
    $region4: #{tpu_custom_call.1} parent=1 // pred_region
      _
    $region5: #{tpu_custom_call.1} parent=1 // pred_fallthru
      _
    // Predicated region
    $region6: #{tpu_custom_call.1} parent=1 // pred_check
      _
    $region7: #{tpu_custom_call.1} parent=1 // pred_check_branch
      %12 = sbr.rel (0) target = $region9
    $region8: #{tpu_custom_call.1} parent=1 // pred_region
      %s14 = ssub.s32 3456, 3456
      %15 = vsyncadd [#allocation3], %s14
      %s16 = sshll.u32 [#allocation2], 4
      %s17 = int_to_ptr.vmem [resolvable:$true] %s16
      %22 = dma.hbm_to_vmem [thread:$0]  %s1, 3456, %s17, [#allocation3], 128, 128, 8
    $region9: #{tpu_custom_call.1} parent=1 // pred_fallthru
      _
    // Predicated region
    $region10: #{tpu_custom_call.1} parent=1 // pred_check
      _
    $region11: #{tpu_custom_call.1} parent=1 // pred_check_branch
      %24 = sbr.rel (0) target = $region13
    $region12: #{tpu_custom_call.1} parent=1 // pred_region
      %25 = dma.done [#allocation3], 3456
    $region13: #{tpu_custom_call.1} parent=1 // pred_fallthru
      _
    %v26 = vld [vmem:[%s0] sm:$0xff]
    %v27 = vld [vmem:[%s0 + $0x8] sm:$0xff]
    %v28 = vld [vmem:[%s0 + $0x10] sm:$0xff]
    %v29 = vld [vmem:[%s0 + $0x18] sm:$0xff]
    %v30 = vld [vmem:[%s0 + $0x20] sm:$0xff]
    %v31 = vld [vmem:[%s0 + $0x28] sm:$0xff]
    %v32 = vld [vmem:[%s0 + $0x30] sm:$0xff]
    %v33 = vld [vmem:[%s0 + $0x38] sm:$0xff]
    %v34 = vcvt.f32.s32.to.zero.pseudo %v32
    %v35 = vcvt.f32.s32.to.zero.pseudo %v33
    %v36 = vld [vmem:[#allocation2] sm:$0xff]
    %v37 = vld [vmem:[#allocation2 + $0x8] sm:$0xff]
    %v38 = vld [vmem:[#allocation2 + $0x10] sm:$0xff]
    %v39 = vld [vmem:[#allocation2 + $0x18] sm:$0xff]
    %v40 = vld [vmem:[#allocation2 + $0x20] sm:$0xff]
    %v41 = vld [vmem:[#allocation2 + $0x28] sm:$0xff]
    %v42 = vld [vmem:[#allocation2 + $0x30] sm:$0xff]
    %v43 = vld [vmem:[#allocation2 + $0x38] sm:$0xff]
    %v44 = vld [vmem:[#allocation2 + $0x40] sm:$0xff]
    %v45 = vld [vmem:[#allocation2 + $0x48] sm:$0xff]
    %v46 = vld [vmem:[#allocation2 + $0x50] sm:$0xff]
    %v47 = vld [vmem:[#allocation2 + $0x58] sm:$0xff]
    %v48 = vld [vmem:[#allocation2 + $0x60] sm:$0xff]
    %v49 = vld [vmem:[#allocation2 + $0x68] sm:$0xff]
    %v50 = vld [vmem:[#allocation2 + $0x70] sm:$0xff]
    %v51 = vld [vmem:[#allocation2 + $0x78] sm:$0xff]
    %v52 = vld [vmem:[#allocation2 + $0x80] sm:$0xff]
    %v53 = vld [vmem:[#allocation2 + $0x88] sm:$0xff]
    %v54 = vld [vmem:[#allocation2 + $0x90] sm:$0xff]
    %v55 = vld [vmem:[#allocation2 + $0x98] sm:$0xff]
    %v56 = vld [vmem:[#allocation2 + $0xa0] sm:$0xff]
    %v57 = vld [vmem:[#allocation2 + $0xa8] sm:$0xff]
    %v58 = vld [vmem:[#allocation2 + $0xb0] sm:$0xff]
    %v59 = vld [vmem:[#allocation2 + $0xb8] sm:$0xff]
    %v60 = vld [vmem:[#allocation2 + $0xc0] sm:$0xff]
    %v61 = vld [vmem:[#allocation2 + $0xc8] sm:$0xff]
    %v62 = vld [vmem:[#allocation2 + $0xd0] sm:$0x1]
    %v63 = vlaneseq
    %v64 = vshrl.u32 %v63, 7
    %v65 = vsub.s32 0, %v64
    %v66 = vrot.slane %v62, %v65
    %vm67 = vcmask 261120
    %v69 = vsel %vm67, %v28, 0
    %v72 = vsel %vm67, %v29, 0
    %74 = vmatprep.subr.mxu0 0.0
    %75 = vmatpush1.msra.mxu0 %v58
    %76 = vmatprep.subr.mxu0 0.0
    %77 = vmatpush1.msra.mxu0 %v59
    %78 = vmatprep.subr.mxu0 0.0
    %79 = vmatpush1.msra.mxu0 %v60
    %80 = vmatprep.subr.mxu0 0.0
    %81 = vmatpush1.msra.mxu0 %v61
    %82 = vmatprep.subr.mxu0 0.0
    %83 = vmatpush1.msra.mxu0 0.0
    %84 = vmatprep.subr.mxu0 0.0
    %85 = vmatpush1.msra.mxu0 0.0
    %86 = vmatprep.subr.mxu0 0.0
    %87 = vmatpush1.msra.mxu0 0.0
    %88 = vmatprep.subr.mxu0 0.0
    %89 = vmatpush1.msra.mxu0 0.0
    %90 = vmatprep.subr.mxu0 0.0
    %91 = vmatpush1.msra.mxu0 0.0
    %92 = vmatprep.subr.mxu0 0.0
    %93 = vmatpush1.msra.mxu0 0.0
    %94 = vmatprep.subr.mxu0 0.0
    %95 = vmatpush1.msra.mxu0 0.0
    %96 = vmatprep.subr.mxu0 0.0
    %97 = vmatpush1.msra.mxu0 0.0
    %98 = vmatprep.subr.mxu0 0.0
    %99 = vmatpush1.msra.mxu0 0.0
    %100 = vmatprep.subr.mxu0 0.0
    %101 = vmatpush1.msra.mxu0 0.0
    %102 = vmatprep.subr.mxu0 0.0
    %103 = vmatpush1.msra.mxu0 0.0
    %104 = vmatprep.subr.mxu0 0.0
    %105 = vmatpush1.msra.mxu0 0.0
    %106 = vmatprep.subr.mxu0 0.0
    %107 = vmatpush1.msra.mxu0 0.0
    %108 = vmatprep.subr.mxu0 0.0
    %109 = vmatpush1.msra.mxu0 0.0
    %110 = vmatprep.subr.mxu0 0.0
    %111 = vmatpush1.msra.mxu0 0.0
    %112 = vmatprep.subr.mxu0 0.0
    %113 = vmatpush1.msra.mxu0 0.0
    %114 = vmatprep.subr.mxu0 0.0
    %115 = vmatpush1.msra.mxu0 0.0
    %116 = vmatprep.subr.mxu0 0.0
    %117 = vmatpush1.msra.mxu0 0.0
    %118 = vmatprep.subr.mxu0 0.0
    %119 = vmatpush1.msra.mxu0 0.0
    %120 = vmatprep.subr.mxu0 0.0
    %121 = vmatpush1.msra.mxu0 0.0
    %122 = vmatprep.subr.mxu0 0.0
    %123 = vmatpush1.msra.mxu0 0.0
    %124 = vmatprep.subr.mxu0 0.0
    %125 = vmatpush1.msra.mxu0 0.0
    %126 = vmatprep.subr.mxu0 0.0
    %127 = vmatpush1.msra.mxu0 0.0
    %128 = vmatprep.subr.mxu0 0.0
    %129 = vmatpush1.msra.mxu0 0.0
    %130 = vmatprep.subr.mxu0 0.0
    %131 = vmatpush1.msra.mxu0 0.0
    %132 = vmatprep.subr.mxu0 0.0
    %133 = vmatpush1.msra.mxu0 0.0
    %134 = vmatprep.subr.mxu0 0.0
    %135 = vmatpush1.msra.mxu0 0.0
    %136 = vmatprep.subr.mxu0 0.0
    %137 = vmatpush1.msra.mxu0 0.0
    %138 = vmatprep.mubr.f32.mxu0 0.0
    %139 = vmatmul.mubr.f32.gmra.mrb[0].mxu0 %v69
    %v140 = vpop.f32.mrb[0].mxu0
    %v141 = vadd.f32 %v66, %v140
    %v142 = vpop.f32.mrb[0].mxu0
    %143 = vmatprep.mubr.f32.mxu0 0.0
    %144 = vmatmul.mubr.f32.gmra.mrb[0].mxu0 %v72
    %v145 = vpop.f32.mrb[0].mxu0
    %v146 = vadd.f32 %v66, %v145
    %v147 = vpop.f32.mrb[0].mxu0
    %148 = vdwg.mxu0
    %v150 = vsel %vm67, %v26, 0
    %v153 = vsel %vm67, %v27, 0
    %155 = vmatprep.subr.mxu0 0.0
    %156 = vmatpush1.msra.mxu0 %v54
    %157 = vmatprep.subr.mxu0 0.0
    %158 = vmatpush1.msra.mxu0 %v55
    %159 = vmatprep.subr.mxu0 0.0
    %160 = vmatpush1.msra.mxu0 %v56
    %161 = vmatprep.subr.mxu0 0.0
    %162 = vmatpush1.msra.mxu0 %v57
    %163 = vmatprep.subr.mxu0 0.0
    %164 = vmatpush1.msra.mxu0 0.0
    %165 = vmatprep.subr.mxu0 0.0
    %166 = vmatpush1.msra.mxu0 0.0
    %167 = vmatprep.subr.mxu0 0.0
    %168 = vmatpush1.msra.mxu0 0.0
    %169 = vmatprep.subr.mxu0 0.0
    %170 = vmatpush1.msra.mxu0 0.0
    %171 = vmatprep.subr.mxu0 0.0
    %172 = vmatpush1.msra.mxu0 0.0
    %173 = vmatprep.subr.mxu0 0.0
    %174 = vmatpush1.msra.mxu0 0.0
    %175 = vmatprep.subr.mxu0 0.0
    %176 = vmatpush1.msra.mxu0 0.0
    %177 = vmatprep.subr.mxu0 0.0
    %178 = vmatpush1.msra.mxu0 0.0
    %179 = vmatprep.subr.mxu0 0.0
    %180 = vmatpush1.msra.mxu0 0.0
    %181 = vmatprep.subr.mxu0 0.0
    %182 = vmatpush1.msra.mxu0 0.0
    %183 = vmatprep.subr.mxu0 0.0
    %184 = vmatpush1.msra.mxu0 0.0
    %185 = vmatprep.subr.mxu0 0.0
    %186 = vmatpush1.msra.mxu0 0.0
    %187 = vmatprep.subr.mxu0 0.0
    %188 = vmatpush1.msra.mxu0 0.0
    %189 = vmatprep.subr.mxu0 0.0
    %190 = vmatpush1.msra.mxu0 0.0
    %191 = vmatprep.subr.mxu0 0.0
    %192 = vmatpush1.msra.mxu0 0.0
    %193 = vmatprep.subr.mxu0 0.0
    %194 = vmatpush1.msra.mxu0 0.0
    %195 = vmatprep.subr.mxu0 0.0
    %196 = vmatpush1.msra.mxu0 0.0
    %197 = vmatprep.subr.mxu0 0.0
    %198 = vmatpush1.msra.mxu0 0.0
    %199 = vmatprep.subr.mxu0 0.0
    %200 = vmatpush1.msra.mxu0 0.0
    %201 = vmatprep.subr.mxu0 0.0
    %202 = vmatpush1.msra.mxu0 0.0
    %203 = vmatprep.subr.mxu0 0.0
    %204 = vmatpush1.msra.mxu0 0.0
    %205 = vmatprep.subr.mxu0 0.0
    %206 = vmatpush1.msra.mxu0 0.0
    %207 = vmatprep.subr.mxu0 0.0
    %208 = vmatpush1.msra.mxu0 0.0
    %209 = vmatprep.subr.mxu0 0.0
    %210 = vmatpush1.msra.mxu0 0.0
    %211 = vmatprep.subr.mxu0 0.0
    %212 = vmatpush1.msra.mxu0 0.0
    %213 = vmatprep.subr.mxu0 0.0
    %214 = vmatpush1.msra.mxu0 0.0
    %215 = vmatprep.subr.mxu0 0.0
    %216 = vmatpush1.msra.mxu0 0.0
    %217 = vmatprep.subr.mxu0 0.0
    %218 = vmatpush1.msra.mxu0 0.0
    %219 = vmatprep.mubr.f32.mxu0 0.0
    %220 = vmatmul.mubr.f32.gmra.mrb[0].mxu0 %v150
    %v221 = vpop.f32.mrb[0].mxu0
    %v222 = vadd.f32 0.0, %v221
    %v223 = vpop.f32.mrb[0].mxu0
    %224 = vmatprep.mubr.f32.mxu0 0.0
    %225 = vmatmul.mubr.f32.gmra.mrb[0].mxu0 %v153
    %v226 = vpop.f32.mrb[0].mxu0
    %v227 = vadd.f32 0.0, %v226
    %v228 = vpop.f32.mrb[0].mxu0
    %229 = vdwg.mxu0
    %vm230 = vcmask 130048
    %v232 = vsel %vm230, %v222, 0
    %v235 = vsel %vm230, %v227, 0
    %237 = vmatprep.subr.mxu0 0.0
    %238 = vmatpush1.msra.mxu0 %v36
    %239 = vmatprep.subr.mxu0 0.0
    %240 = vmatpush1.msra.mxu0 %v37
    %241 = vmatprep.subr.mxu0 0.0
    %242 = vmatpush1.msra.mxu0 0.0
    %243 = vmatprep.subr.mxu0 0.0
    %244 = vmatpush1.msra.mxu0 0.0
    %245 = vmatprep.subr.mxu0 0.0
    %246 = vmatpush1.msra.mxu0 0.0
    %247 = vmatprep.subr.mxu0 0.0
    %248 = vmatpush1.msra.mxu0 0.0
    %249 = vmatprep.subr.mxu0 0.0
    %250 = vmatpush1.msra.mxu0 0.0
    %251 = vmatprep.subr.mxu0 0.0
    %252 = vmatpush1.msra.mxu0 0.0
    %253 = vmatprep.subr.mxu0 0.0
    %254 = vmatpush1.msra.mxu0 0.0
    %255 = vmatprep.subr.mxu0 0.0
    %256 = vmatpush1.msra.mxu0 0.0
    %257 = vmatprep.subr.mxu0 0.0
    %258 = vmatpush1.msra.mxu0 0.0
    %259 = vmatprep.subr.mxu0 0.0
    %260 = vmatpush1.msra.mxu0 0.0
    %261 = vmatprep.subr.mxu0 0.0
    %262 = vmatpush1.msra.mxu0 0.0
    %263 = vmatprep.subr.mxu0 0.0
    %264 = vmatpush1.msra.mxu0 0.0
    %265 = vmatprep.subr.mxu0 0.0
    %266 = vmatpush1.msra.mxu0 0.0
    %267 = vmatprep.subr.mxu0 0.0
    %268 = vmatpush1.msra.mxu0 0.0
    %269 = vmatprep.subr.mxu0 0.0
    %270 = vmatpush1.msra.mxu0 0.0
    %271 = vmatprep.subr.mxu0 0.0
    %272 = vmatpush1.msra.mxu0 0.0
    %273 = vmatprep.subr.mxu0 0.0
    %274 = vmatpush1.msra.mxu0 0.0
    %275 = vmatprep.subr.mxu0 0.0
    %276 = vmatpush1.msra.mxu0 0.0
    %277 = vmatprep.subr.mxu0 0.0
    %278 = vmatpush1.msra.mxu0 0.0
    %279 = vmatprep.subr.mxu0 0.0
    %280 = vmatpush1.msra.mxu0 0.0
    %281 = vmatprep.subr.mxu0 0.0
    %282 = vmatpush1.msra.mxu0 0.0
    %283 = vmatprep.subr.mxu0 0.0
    %284 = vmatpush1.msra.mxu0 0.0
    %285 = vmatprep.subr.mxu0 0.0
    %286 = vmatpush1.msra.mxu0 0.0
    %287 = vmatprep.subr.mxu0 0.0
    %288 = vmatpush1.msra.mxu0 0.0
    %289 = vmatprep.subr.mxu0 0.0
    %290 = vmatpush1.msra.mxu0 0.0
    %291 = vmatprep.subr.mxu0 0.0
    %292 = vmatpush1.msra.mxu0 0.0
    %293 = vmatprep.subr.mxu0 0.0
    %294 = vmatpush1.msra.mxu0 0.0
    %295 = vmatprep.subr.mxu0 0.0
    %296 = vmatpush1.msra.mxu0 0.0
    %297 = vmatprep.subr.mxu0 0.0
    %298 = vmatpush1.msra.mxu0 0.0
    %299 = vmatprep.subr.mxu0 0.0
    %300 = vmatpush1.msra.mxu0 0.0
    %301 = vmatprep.mubr.f32.mxu0 0.0
    %302 = vmatmul.mubr.f32.gmra.mrb[0].mxu0 %v232
    %v303 = vpop.f32.mrb[0].mxu0
    %v304 = vadd.f32 0.0, %v303
    %v305 = vpop.f32.mrb[0].mxu0
    %306 = vmatprep.mubr.f32.mxu0 0.0
    %307 = vmatmul.mubr.f32.gmra.mrb[0].mxu0 %v235
    %v308 = vpop.f32.mrb[0].mxu0
    %v309 = vadd.f32 0.0, %v308
    %v310 = vpop.f32.mrb[0].mxu0
    %311 = vdwg.mxu0
    %v312 = vlaneseq
    %v313 = vand.u32 %v312, 127
    %314 = vset.pattern.permute.xlu0 0
    %315 = vperm.xlu0 %314, %v34
    %v316 = vpop.permute.xlu0 %315
    %317 = vset.pattern.permute.xlu0 0
    %318 = vperm.xlu0 %317, %v35
    %v319 = vpop.permute.xlu0 %318
    %vm320 = vcmp.eq.s32.totalorder %v316, %v313
    %vm321 = vcmp.eq.s32.totalorder %v319, %v313
    %v322 = vsel %vm320, 1, 0
    %v323 = vsel %vm321, 1, 0
    %v324 = vcvt.s32.f32 %v322
    %v325 = vcvt.s32.f32 %v323
    %v326 = vmul.f32 %v324, %v304
    %v327 = vmul.f32 %v325, %v309
    %328 = vadd.xlane.f32.xlu0 %v326
    %v329 = vpop.xlane.xlu0 %328
    %330 = vadd.xlane.f32.xlu0 %v327
    %v331 = vpop.xlane.xlu0 %330
    %332 = vset.pattern.permute.xlu0 1
    %333 = vperm.xlu0 %332, %v34
    %v334 = vpop.permute.xlu0 %333
    %335 = vset.pattern.permute.xlu0 1
    %336 = vperm.xlu0 %335, %v35
    %v337 = vpop.permute.xlu0 %336
    %vm338 = vcmp.eq.s32.totalorder %v334, %v313
    %vm339 = vcmp.eq.s32.totalorder %v337, %v313
    %v340 = vsel %vm338, 1, 0
    %v341 = vsel %vm339, 1, 0
    %v342 = vcvt.s32.f32 %v340
    %v343 = vcvt.s32.f32 %v341
    %v344 = vmul.f32 %v342, %v304
    %v345 = vmul.f32 %v343, %v309
    %346 = vadd.xlane.f32.xlu0 %v344
    %v347 = vpop.xlane.xlu0 %346
    %348 = vadd.xlane.f32.xlu0 %v345
    %v349 = vpop.xlane.xlu0 %348
    %350 = vset.pattern.permute.xlu0 2
    %351 = vperm.xlu0 %350, %v34
    %v352 = vpop.permute.xlu0 %351
    %353 = vset.pattern.permute.xlu0 2
    %354 = vperm.xlu0 %353, %v35
    %v355 = vpop.permute.xlu0 %354
    %vm356 = vcmp.eq.s32.totalorder %v352, %v313
    %vm357 = vcmp.eq.s32.totalorder %v355, %v313
    %v358 = vsel %vm356, 1, 0
    %v359 = vsel %vm357, 1, 0
    %v360 = vcvt.s32.f32 %v358
    %v361 = vcvt.s32.f32 %v359
    %v362 = vmul.f32 %v360, %v304
    %v363 = vmul.f32 %v361, %v309
    %364 = vadd.xlane.f32.xlu0 %v362
    %v365 = vpop.xlane.xlu0 %364
    %366 = vadd.xlane.f32.xlu0 %v363
    %v367 = vpop.xlane.xlu0 %366
    %368 = vset.pattern.permute.xlu0 3
    %369 = vperm.xlu0 %368, %v34
    %v370 = vpop.permute.xlu0 %369
    %371 = vset.pattern.permute.xlu0 3
    %372 = vperm.xlu0 %371, %v35
    %v373 = vpop.permute.xlu0 %372
    %vm374 = vcmp.eq.s32.totalorder %v370, %v313
    %vm375 = vcmp.eq.s32.totalorder %v373, %v313
    %v376 = vsel %vm374, 1, 0
    %v377 = vsel %vm375, 1, 0
    %v378 = vcvt.s32.f32 %v376
    %v379 = vcvt.s32.f32 %v377
    %v380 = vmul.f32 %v378, %v304
    %v381 = vmul.f32 %v379, %v309
    %382 = vadd.xlane.f32.xlu0 %v380
    %v383 = vpop.xlane.xlu0 %382
    %384 = vadd.xlane.f32.xlu0 %v381
    %v385 = vpop.xlane.xlu0 %384
    %v386 = vmul.f32 %v141, %v222
    %v387 = vmul.f32 %v146, %v227
    %v388 = vsel %vm230, %v386, 0.0
    %389 = vadd.xlane.f32.xlu0 %v388
    %v390 = vpop.xlane.xlu0 %389
    %v391 = vsel %vm230, %v387, 0.0
    %392 = vadd.xlane.f32.xlu0 %v391
    %v393 = vpop.xlane.xlu0 %392
    %v394 = vsub.f32 1.0, %v30
    %v395 = vsub.f32 1.0, %v31
    %v396 = vmul.f32 %v394, -10000.0
    %v397 = vmul.f32 %v395, -10000.0
    %v398 = vadd.f32 %v329, %v396
    %v399 = vadd.f32 %v331, %v397
    %v400 = vadd.f32 %v347, %v396
    %v401 = vadd.f32 %v349, %v397
    %v402 = vadd.f32 %v365, %v396
    %v403 = vadd.f32 %v367, %v397
    %v404 = vadd.f32 %v383, %v396
    %v405 = vadd.f32 %v385, %v397
    %v406 = vadd.f32 %v390, %v396
    %v407 = vadd.f32 %v393, %v397
    %410 = vrot.lane.b32.xlu0 %v400, 127
    %v411 = vpop.permute.xlu0 %410
    %412 = vrot.lane.b32.xlu0 %v401, 127
    %v413 = vpop.permute.xlu0 %412
    %v416 = vmax.f32 %v398, %v411
    %v417 = vmax.f32 %v399, %v413
    %420 = vrot.lane.b32.xlu0 %v402, 126
    %v421 = vpop.permute.xlu0 %420
    %422 = vrot.lane.b32.xlu0 %v403, 126
    %v423 = vpop.permute.xlu0 %422
    %v426 = vmax.f32 %v416, %v421
    %v427 = vmax.f32 %v417, %v423
    %430 = vrot.lane.b32.xlu0 %v404, 125
    %v431 = vpop.permute.xlu0 %430
    %432 = vrot.lane.b32.xlu0 %v405, 125
    %v433 = vpop.permute.xlu0 %432
    %v436 = vmax.f32 %v426, %v431
    %v437 = vmax.f32 %v427, %v433
    %440 = vrot.lane.b32.xlu0 %v406, 124
    %v441 = vpop.permute.xlu0 %440
    %442 = vrot.lane.b32.xlu0 %v407, 124
    %v443 = vpop.permute.xlu0 %442
    %v446 = vmax.f32 %v436, %v441
    %v447 = vmax.f32 %v437, %v443
    %v448 = vsub.f32 %v398, %v446
    %v449 = vsub.f32 %v399, %v447
    %v450 = vmul.f32 %v448, 1.442695
    %v451 = vpow.pop %v450
    %v452 = vmul.f32 %v449, 1.442695
    %v453 = vpow.pop %v452
    %456 = vrot.lane.b32.xlu0 %v446, 1
    %v457 = vpop.permute.xlu0 %456
    %458 = vrot.lane.b32.xlu0 %v447, 1
    %v459 = vpop.permute.xlu0 %458
    %v462 = vsub.f32 %v400, %v457
    %v463 = vsub.f32 %v401, %v459
    %v464 = vmul.f32 %v462, 1.442695
    %v465 = vpow.pop %v464
    %v466 = vmul.f32 %v463, 1.442695
    %v467 = vpow.pop %v466
    %468 = vrot.lane.b32.xlu0 %v446, 2
    %v469 = vpop.permute.xlu0 %468
    %470 = vrot.lane.b32.xlu0 %v447, 2
    %v471 = vpop.permute.xlu0 %470
    %v474 = vsub.f32 %v402, %v469
    %v475 = vsub.f32 %v403, %v471
    %v476 = vmul.f32 %v474, 1.442695
    %v477 = vpow.pop %v476
    %v478 = vmul.f32 %v475, 1.442695
    %v479 = vpow.pop %v478
    %480 = vrot.lane.b32.xlu0 %v446, 3
    %v481 = vpop.permute.xlu0 %480
    %482 = vrot.lane.b32.xlu0 %v447, 3
    %v483 = vpop.permute.xlu0 %482
    %v486 = vsub.f32 %v404, %v481
    %v487 = vsub.f32 %v405, %v483
    %v488 = vmul.f32 %v486, 1.442695
    %v489 = vpow.pop %v488
    %v490 = vmul.f32 %v487, 1.442695
    %v491 = vpow.pop %v490
    %492 = vrot.lane.b32.xlu0 %v446, 4
    %v493 = vpop.permute.xlu0 %492
    %494 = vrot.lane.b32.xlu0 %v447, 4
    %v495 = vpop.permute.xlu0 %494
    %v498 = vsub.f32 %v406, %v493
    %v499 = vsub.f32 %v407, %v495
    %v500 = vmul.f32 %v498, 1.442695
    %v501 = vpow.pop %v500
    %v502 = vmul.f32 %v499, 1.442695
    %v503 = vpow.pop %v502
    %506 = vrot.lane.b32.xlu0 %v465, 127
    %v507 = vpop.permute.xlu0 %506
    %508 = vrot.lane.b32.xlu0 %v467, 127
    %v509 = vpop.permute.xlu0 %508
    %v512 = vadd.f32 %v451, %v507
    %v513 = vadd.f32 %v453, %v509
    %516 = vrot.lane.b32.xlu0 %v477, 126
    %v517 = vpop.permute.xlu0 %516
    %518 = vrot.lane.b32.xlu0 %v479, 126
    %v519 = vpop.permute.xlu0 %518
    %v522 = vadd.f32 %v512, %v517
    %v523 = vadd.f32 %v513, %v519
    %526 = vrot.lane.b32.xlu0 %v489, 125
    %v527 = vpop.permute.xlu0 %526
    %528 = vrot.lane.b32.xlu0 %v491, 125
    %v529 = vpop.permute.xlu0 %528
    %v532 = vadd.f32 %v522, %v527
    %v533 = vadd.f32 %v523, %v529
    %536 = vrot.lane.b32.xlu0 %v501, 124
    %v537 = vpop.permute.xlu0 %536
    %538 = vrot.lane.b32.xlu0 %v503, 124
    %v539 = vpop.permute.xlu0 %538
    %v542 = vadd.f32 %v532, %v537
    %v543 = vadd.f32 %v533, %v539
    %v544 = vrcp.pop %v542
    %v545 = vrcp.pop %v543
    %v546 = vmul.f32 %v542, %v544
    %v547 = vmul.f32 %v543, %v545
    %v548 = vsub.f32 2.0, %v546
    %v549 = vsub.f32 2.0, %v547
    %v550 = vmul.f32 %v544, %v548
    %v551 = vmul.f32 %v545, %v549
    %v552 = vmul.f32 %v451, %v550
    %v553 = vmul.f32 %v453, %v551
    %v554 = vmul.f32 %v552, %v30
    %v555 = vmul.f32 %v553, %v31
    %558 = vrot.lane.b32.xlu0 %v550, 1
    %v559 = vpop.permute.xlu0 %558
    %560 = vrot.lane.b32.xlu0 %v551, 1
    %v561 = vpop.permute.xlu0 %560
    %v564 = vmul.f32 %v465, %v559
    %v565 = vmul.f32 %v467, %v561
    %v566 = vmul.f32 %v564, %v30
    %v567 = vmul.f32 %v565, %v31
    %568 = vrot.lane.b32.xlu0 %v550, 2
    %v569 = vpop.permute.xlu0 %568
    %570 = vrot.lane.b32.xlu0 %v551, 2
    %v571 = vpop.permute.xlu0 %570
    %v574 = vmul.f32 %v477, %v569
    %v575 = vmul.f32 %v479, %v571
    %v576 = vmul.f32 %v574, %v30
    %v577 = vmul.f32 %v575, %v31
    %578 = vrot.lane.b32.xlu0 %v550, 3
    %v579 = vpop.permute.xlu0 %578
    %580 = vrot.lane.b32.xlu0 %v551, 3
    %v581 = vpop.permute.xlu0 %580
    %v584 = vmul.f32 %v489, %v579
    %v585 = vmul.f32 %v491, %v581
    %v586 = vmul.f32 %v584, %v30
    %v587 = vmul.f32 %v585, %v31
    %588 = vrot.lane.b32.xlu0 %v550, 4
    %v589 = vpop.permute.xlu0 %588
    %590 = vrot.lane.b32.xlu0 %v551, 4
    %v591 = vpop.permute.xlu0 %590
    %v594 = vmul.f32 %v501, %v589
    %v595 = vmul.f32 %v503, %v591
    %v596 = vmul.f32 %v594, %v30
    %v597 = vmul.f32 %v595, %v31
    %599 = vset.pattern.permute.xlu0 0
    %600 = vperm.xlu0 %599, %v554
    %v601 = vpop.permute.xlu0 %600
    %604 = vset.pattern.permute.xlu0 0
    %605 = vperm.xlu0 %604, %v555
    %v606 = vpop.permute.xlu0 %605
    %v608 = vmul.f32 %v601, %v324
    %v609 = vmul.f32 %v606, %v325
    %611 = vset.pattern.permute.xlu0 1
    %612 = vperm.xlu0 %611, %v566
    %v613 = vpop.permute.xlu0 %612
    %616 = vset.pattern.permute.xlu0 1
    %617 = vperm.xlu0 %616, %v567
    %v618 = vpop.permute.xlu0 %617
    %v620 = vmul.f32 %v613, %v342
    %v621 = vmul.f32 %v618, %v343
    %v622 = vadd.f32 %v608, %v620
    %v623 = vadd.f32 %v609, %v621
    %625 = vset.pattern.permute.xlu0 2
    %626 = vperm.xlu0 %625, %v576
    %v627 = vpop.permute.xlu0 %626
    %630 = vset.pattern.permute.xlu0 2
    %631 = vperm.xlu0 %630, %v577
    %v632 = vpop.permute.xlu0 %631
    %v634 = vmul.f32 %v627, %v360
    %v635 = vmul.f32 %v632, %v361
    %v636 = vadd.f32 %v622, %v634
    %v637 = vadd.f32 %v623, %v635
    %639 = vset.pattern.permute.xlu0 3
    %640 = vperm.xlu0 %639, %v586
    %v641 = vpop.permute.xlu0 %640
    %644 = vset.pattern.permute.xlu0 3
    %645 = vperm.xlu0 %644, %v587
    %v646 = vpop.permute.xlu0 %645
    %v648 = vmul.f32 %v641, %v378
    %v649 = vmul.f32 %v646, %v379
    %v650 = vadd.f32 %v636, %v648
    %v651 = vadd.f32 %v637, %v649
    %653 = vset.pattern.permute.xlu0 4
    %654 = vperm.xlu0 %653, %v596
    %v655 = vpop.permute.xlu0 %654
    %658 = vset.pattern.permute.xlu0 4
    %659 = vperm.xlu0 %658, %v597
    %v660 = vpop.permute.xlu0 %659
    %v662 = vmul.f32 %v655, %v141
    %v663 = vmul.f32 %v660, %v146
    %664 = vmatprep.subr.mxu0 0.0
    %665 = vmatpush1.msra.mxu0 %v38
    %666 = vmatprep.subr.mxu0 0.0
    %667 = vmatpush1.msra.mxu0 %v39
    %668 = vmatprep.subr.mxu0 0.0
    %669 = vmatpush1.msra.mxu0 %v40
    %670 = vmatprep.subr.mxu0 0.0
    %671 = vmatpush1.msra.mxu0 %v41
    %672 = vmatprep.subr.mxu0 0.0
    %673 = vmatpush1.msra.mxu0 %v42
    %674 = vmatprep.subr.mxu0 0.0
    %675 = vmatpush1.msra.mxu0 %v43
    %676 = vmatprep.subr.mxu0 0.0
    %677 = vmatpush1.msra.mxu0 %v44
    %678 = vmatprep.subr.mxu0 0.0
    %679 = vmatpush1.msra.mxu0 %v45
    %680 = vmatprep.subr.mxu0 0.0
    %681 = vmatpush1.msra.mxu0 %v46
    %682 = vmatprep.subr.mxu0 0.0
    %683 = vmatpush1.msra.mxu0 %v47
    %684 = vmatprep.subr.mxu0 0.0
    %685 = vmatpush1.msra.mxu0 %v48
    %686 = vmatprep.subr.mxu0 0.0
    %687 = vmatpush1.msra.mxu0 %v49
    %688 = vmatprep.subr.mxu0 0.0
    %689 = vmatpush1.msra.mxu0 %v50
    %690 = vmatprep.subr.mxu0 0.0
    %691 = vmatpush1.msra.mxu0 %v51
    %692 = vmatprep.subr.mxu0 0.0
    %693 = vmatpush1.msra.mxu0 %v52
    %694 = vmatprep.subr.mxu0 0.0
    %695 = vmatpush1.msra.mxu0 %v53
    %696 = vmatprep.subr.mxu0 0.0
    %697 = vmatpush1.msra.mxu0 0.0
    %698 = vmatprep.subr.mxu0 0.0
    %699 = vmatpush1.msra.mxu0 0.0
    %700 = vmatprep.subr.mxu0 0.0
    %701 = vmatpush1.msra.mxu0 0.0
    %702 = vmatprep.subr.mxu0 0.0
    %703 = vmatpush1.msra.mxu0 0.0
    %704 = vmatprep.subr.mxu0 0.0
    %705 = vmatpush1.msra.mxu0 0.0
    %706 = vmatprep.subr.mxu0 0.0
    %707 = vmatpush1.msra.mxu0 0.0
    %708 = vmatprep.subr.mxu0 0.0
    %709 = vmatpush1.msra.mxu0 0.0
    %710 = vmatprep.subr.mxu0 0.0
    %711 = vmatpush1.msra.mxu0 0.0
    %712 = vmatprep.subr.mxu0 0.0
    %713 = vmatpush1.msra.mxu0 0.0
    %714 = vmatprep.subr.mxu0 0.0
    %715 = vmatpush1.msra.mxu0 0.0
    %716 = vmatprep.subr.mxu0 0.0
    %717 = vmatpush1.msra.mxu0 0.0
    %718 = vmatprep.subr.mxu0 0.0
    %719 = vmatpush1.msra.mxu0 0.0
    %720 = vmatprep.subr.mxu0 0.0
    %721 = vmatpush1.msra.mxu0 0.0
    %722 = vmatprep.subr.mxu0 0.0
    %723 = vmatpush1.msra.mxu0 0.0
    %724 = vmatprep.subr.mxu0 0.0
    %725 = vmatpush1.msra.mxu0 0.0
    %726 = vmatprep.subr.mxu0 0.0
    %727 = vmatpush1.msra.mxu0 0.0
    %728 = vmatprep.mubr.f32.mxu0 0.0
    %729 = vmatmul.mubr.f32.gmra.mrb[0].mxu0 %v650
    %v730 = vpop.f32.mrb[0].mxu0
    %v731 = vadd.f32 %v662, %v730
    %v732 = vpop.f32.mrb[0].mxu0
    %733 = vmatprep.mubr.f32.mxu0 0.0
    %734 = vmatmul.mubr.f32.gmra.mrb[0].mxu0 %v651
    %v735 = vpop.f32.mrb[0].mxu0
    %v736 = vadd.f32 %v663, %v735
    %v737 = vpop.f32.mrb[0].mxu0
    %738 = vdwg.mxu0
    %739 = vst.msk [vmem:[#allocation5] sm:$0xff] %vm230, %v731
    %740 = vst.msk [vmem:[#allocation5 + $0x8] sm:$0xff] %vm230, %v736
    // Predicated region
    $region14: #{tpu_custom_call.1} parent=1 // pred_check
      _
    $region15: #{tpu_custom_call.1} parent=1 // pred_check_branch
      %742 = sbr.rel (0) target = $region17
    $region16: #{tpu_custom_call.1} parent=1 // pred_region
      %s744 = ssub.s32 256, 256
      %745 = vsyncadd [#allocation4], %s744
      %s746 = sshll.u32 [#allocation5], 4
      %s747 = int_to_ptr.vmem [resolvable:$true] %s746
      %752 = dma.vmem_to_hbm [thread:$0]  %s747, 256, %s2, [#allocation4], 128, 128, 8
    $region17: #{tpu_custom_call.1} parent=1 // pred_fallthru
      _
    // Predicated region
    $region18: #{tpu_custom_call.1} parent=1 // pred_check
      _
    $region19: #{tpu_custom_call.1} parent=1 // pred_check_branch
      %754 = sbr.rel (0) target = $region21
    $region20: #{tpu_custom_call.1} parent=1 // pred_region
      %755 = dma.done [#allocation4], 256
    $region21: #{tpu_custom_call.1} parent=1 // pred_fallthru
      _
    %756 = vsyncpa [#allocation3], 1
    %757 = vsyncpa [#allocation4], 1

</llo_original>
